<compile_context>
chip_gen: v7x
topology: tpu7x:2x2x1
jax: 0.10.0
libtpu: 0.0.40
codegen_flags: <defaults>
</compile_context>

<pallas_src>
import jax
import jax.numpy as jnp
from jax.experimental import pallas as pl
from jax.experimental.pallas import tpu as pltpu

HIDDEN = 50
LANES = 128

# 1024 rows x 128 lanes = 128K f32 elements per grid step: large enough to
# amortize the ~0.35 us fixed per-step pipeline overhead against HBM time on
# all of v5e/v6e/v7x, small enough (~2 MiB double-buffered in+out) for v7x VMEM.
_DEFAULT_TILE_ROWS = 1024


def _round_up(v, m):
    return ((v + m - 1) // m) * m


def phi_affine_kernel(ac_ref, x_ref, o_ref):
    # ac_ref : SMEM (2,) = [a, c];  x_ref / o_ref : (rows, 128) dense f32 slabs.
    # One dense vld + one VPU mul/add + one dense (unmasked) vst per vreg.
    o_ref[...] = ac_ref[0] * x_ref[...] + ac_ref[1]


def phi_forward(x, w1, b1, w2, b2, *, tile_rows=_DEFAULT_TILE_ROWS):
    """PhiModel forward.

    x : (..., 1) (torch spec is (N, 1); any leading batch shape works).
    w1: (50, 1)  b1: (50,)  w2: (1, 50)  b2: (1,)  -- torch parameter shapes.
    Returns an array with the same shape as x.

    NOTE: callers that can consume a lane-dense layout should take
    out.reshape(-1)[:n] directly; the final reshape back to x.shape is kept
    only for drop-in compatibility with the (N, 1) torch interface.
    """
    orig_shape = x.shape
    xf = x.astype(jnp.float32).reshape(-1)            # (N,) flat batch
    n = xf.shape[0]

    # Collapse fc1 -> fc2 (no nonlinearity in between) to y = a*x + c.
    w1f = w1.astype(jnp.float32).reshape(-1)          # (50,)
    b1f = b1.astype(jnp.float32).reshape(-1)          # (50,)
    w2f = w2.astype(jnp.float32).reshape(-1)          # (50,)
    b2s = b2.astype(jnp.float32).reshape(())          # scalar
    a = jnp.sum(w2f * w1f)
    c = jnp.sum(w2f * b1f) + b2s
    ac = jnp.stack([a, c])                            # (2,) -> SMEM scalars

    # Dense (rows, 128) slab: pad only up to the next 128-lane multiple.
    n128 = max(_round_up(n, LANES), LANES)
    if n128 != n:
        xf = jnp.pad(xf, (0, n128 - n))
    rows = n128 // LANES
    xs = xf.reshape(rows, LANES)

    tile_rows = max(8, (int(tile_rows) // 8) * 8)     # respect the (8,128) rule

    if rows <= tile_rows:
        # Single block, no grid: zero per-step pipeline overhead.
        out = pl.pallas_call(
            phi_affine_kernel,
            out_shape=jax.ShapeDtypeStruct((rows, LANES), jnp.float32),
            in_specs=[
                pl.BlockSpec(memory_space=pltpu.MemorySpace.SMEM),   # [a, c]
                pl.BlockSpec(memory_space=pltpu.MemorySpace.VMEM),   # x slab
            ],
            out_specs=pl.BlockSpec(memory_space=pltpu.MemorySpace.VMEM),
        )(ac, xs)
    else:
        # Tiled row axis; rows > tile_rows guarantees >= 2 grid steps, so the
        # "parallel" axis can be sharded across both TensorCores on v7x.
        out = pl.pallas_call(
            phi_affine_kernel,
            out_shape=jax.ShapeDtypeStruct((rows, LANES), jnp.float32),
            grid=(pl.cdiv(rows, tile_rows),),
            in_specs=[
                pl.BlockSpec(memory_space=pltpu.MemorySpace.SMEM),   # [a, c]
                pl.BlockSpec((tile_rows, LANES), lambda i: (i, 0)),  # x tile
            ],
            out_specs=pl.BlockSpec((tile_rows, LANES), lambda i: (i, 0)),
            compiler_params=pltpu.CompilerParams(
                dimension_semantics=("parallel",)),
        )(ac, xs)

    return out.reshape(-1)[:n].reshape(orig_shape)


def _reference(x, w1, b1, w2, b2):
    # Explicit two-layer elementwise reference (exact f32, no MXU precision noise).
    h = x * w1.reshape(1, -1) + b1.reshape(1, -1)                     # (N, H)
    return jnp.sum(h * w2.reshape(1, -1), axis=-1, keepdims=True) + b2.reshape(1, 1)


if __name__ == "__main__":
    key = jax.random.PRNGKey(0)
    kx, k1, k2, k3, k4, kx2 = jax.random.split(key, 6)

    # Deterministic synthetic parameters (same shapes as the torch __init__).
    w1 = jax.random.uniform(k1, (HIDDEN, 1), minval=-1.0, maxval=1.0, dtype=jnp.float32)
    b1 = jax.random.uniform(k2, (HIDDEN,), minval=-1.0, maxval=1.0, dtype=jnp.float32)
    w2 = jax.random.uniform(k3, (1, HIDDEN), minval=-0.2, maxval=0.2, dtype=jnp.float32)
    b2 = jax.random.uniform(k4, (1,), minval=-0.2, maxval=0.2, dtype=jnp.float32)

    # Small batch -> grid-less dense-slab path (exercises 128-lane padding).
    batch = 8
    x = jax.random.normal(kx, (batch, 1), dtype=jnp.float32)
    out = jax.block_until_ready(phi_forward(x, w1, b1, w2, b2))
    ref = _reference(x, w1, b1, w2, b2)
    assert out.shape == (batch, 1)
    assert jnp.allclose(out, ref, atol=1e-4, rtol=1e-4), (out, ref)

    # Larger, non-multiple-of-128 batch with a deliberately tiny test-only tile
    # -> exercises the tiled "parallel" grid path (3 grid steps) plus the
    # 128-lane pad / un-pad.  Production callers should keep the default tile.
    batch2 = 3000
    x2 = jax.random.normal(kx2, (batch2, 1), dtype=jnp.float32)
    out2 = jax.block_until_ready(phi_forward(x2, w1, b1, w2, b2, tile_rows=8))
    ref2 = _reference(x2, w1, b1, w2, b2)
    assert out2.shape == (batch2, 1)
    assert jnp.allclose(out2, ref2, atol=1e-4, rtol=1e-4), (out2, ref2)

    print("KERNEL_OK")
</pallas_src>

<mosaic_0001>
module attributes {stable_mosaic.version = 11 : i64} {
  func.func @phi_affine_kernel(%arg0: memref<2xf32, #tpu.memory_space<smem>>, %arg1: memref<1x128xf32, #tpu.memory_space<vmem>>, %arg2: memref<1x128xf32, #tpu.memory_space<vmem>>) attributes {dimension_semantics = [], scalar_prefetch = 0 : i64, scratch_operands = 0 : i64, tpu.core_type = #tpu.core_type<tc>} {
    %c0 = arith.constant 0 : index
    %0 = memref.load %arg0[%c0] : memref<2xf32, #tpu.memory_space<smem>>
    %c0_0 = arith.constant 0 : index
    %c0_1 = arith.constant 0 : index
    %1 = vector.load %arg1[%c0_0, %c0_1] : memref<1x128xf32, #tpu.memory_space<vmem>>, vector<1x128xf32>
    %2 = vector.broadcast %0 : f32 to vector<1x128xf32>
    %3 = arith.mulf %2, %1 : vector<1x128xf32>
    %c1 = arith.constant 1 : index
    %4 = memref.load %arg0[%c1] : memref<2xf32, #tpu.memory_space<smem>>
    %5 = vector.broadcast %4 : f32 to vector<1x128xf32>
    %6 = arith.addf %3, %5 : vector<1x128xf32>
    %c0_2 = arith.constant 0 : index
    %c0_3 = arith.constant 0 : index
    %7 = vector.load %arg2[%c0_2, %c0_3] : memref<1x128xf32, #tpu.memory_space<vmem>>, vector<1x128xf32>
    tpu.vector_store %arg2[%c0_2, %c0_3], %6 {strides = array<i32>} : memref<1x128xf32, #tpu.memory_space<vmem>>, vector<1x128xf32>,
    return
  }
}

</mosaic_0001>

<llo_original>
// kernel: tpu_custom_call.1
$region0: #{tpu_custom_call.1}
  #allocation0 [shape = 'u32[]', space=smem, size = 0x4, offset = 0x4, fixed_abs, tag = 'smem constant byte address 0x4 - core index']
  #allocation1 [shape = 'u32[144,128]{1,0:T(1,128)}', space=vmem, size = 0x12000, scoped, tag = 'internal scratch']
  %s0 = inlined_call_operand.hbm [shape: f32[2], index: 0, kind: input, shape index: {}]
  %s1 = inlined_call_operand.vmem [shape: f32[1,128], index: 1, kind: input, shape index: {}]
  %s2 = inlined_call_operand.hbm [shape: f32[1,128], index: 2, kind: output, shape index: {}]
  %s3 = sld [smem:[#allocation0]]
  $region22: #{tpu_custom_call.1} parent=0
    _
  %s5 = ssub.s32 1, %s3
  %s6 = scalar_select 0, %s5, %s3
  $region1: #{tpu_custom_call.1} parent=0
    #allocation2 [shape = 'u8[512]{0}', space=smem, size = 0x200, scoped, tag = 'input window, operand 0, single buffered']
    #allocation3 [shape = 's32[1]{0}', space=sflag, size = 0x4, scoped, tag = 'scoped memory for tpu_custom_call.1']
    #allocation4 [shape = 's32[1]{0}', space=sflag, size = 0x4, scoped, tag = 'scoped memory for tpu_custom_call.1']
    #allocation5 [shape = 'u8[512]{0}', space=vmem, size = 0x400, scoped, tag = 'output window, operand 0, single buffered']
    %7 = vsyncpa [#allocation4], 0
    %8 = vsyncpa [#allocation3], 0
    // Predicated region
    $region2: #{tpu_custom_call.1} parent=1 // pred_check
      _
    $region3: #{tpu_custom_call.1} parent=1 // pred_check_branch
      %10 = sbr.rel (0) target = $region5
    $region4: #{tpu_custom_call.1} parent=1 // pred_region
      %s12 = ssub.s32 16, 16
      %13 = vsyncadd [#allocation4], %s12
      %16 = dma.hbm_to_smem %s0, 16, [#allocation2], [#allocation4]
    $region5: #{tpu_custom_call.1} parent=1 // pred_fallthru
      _
    // Predicated region
    $region6: #{tpu_custom_call.1} parent=1 // pred_check
      _
    $region7: #{tpu_custom_call.1} parent=1 // pred_check_branch
      %18 = sbr.rel (0) target = $region9
    $region8: #{tpu_custom_call.1} parent=1 // pred_region
      _
    $region9: #{tpu_custom_call.1} parent=1 // pred_fallthru
      _
    // Predicated region
    $region10: #{tpu_custom_call.1} parent=1 // pred_check
      _
    $region11: #{tpu_custom_call.1} parent=1 // pred_check_branch
      %20 = sbr.rel (0) target = $region13
    $region12: #{tpu_custom_call.1} parent=1 // pred_region
      %21 = dma.done [#allocation4], 16
    $region13: #{tpu_custom_call.1} parent=1 // pred_fallthru
      _
    %22 = sfence
    %s23 = sld [smem:[#allocation2]]
    %v24 = vld [vmem:[%s1] sm:$0x1]
    %v25 = vstv %s23
    %v26 = vmul.f32 %v25, %v24
    %s27 = sld [smem:[#allocation2 + $0x1]]
    %v28 = vstv %s27
    %v29 = vadd.f32 %v26, %v28
    %30 = vst [vmem:[#allocation5] sm:$0x1] %v29
    // Predicated region
    $region14: #{tpu_custom_call.1} parent=1 // pred_check
      _
    $region15: #{tpu_custom_call.1} parent=1 // pred_check_branch
      %32 = sbr.rel (0) target = $region17
    $region16: #{tpu_custom_call.1} parent=1 // pred_region
      %s34 = ssub.s32 16, 16
      %35 = vsyncadd [#allocation3], %s34
      %s37 = sshll.u32 [#allocation5], 4
      %s38 = int_to_ptr.vmem [resolvable:$true] %s37
      %40 = dma.vmem_to_hbm [thread:$0]  %s38, 16, %s2, [#allocation3]
    $region17: #{tpu_custom_call.1} parent=1 // pred_fallthru
      _
    // Predicated region
    $region18: #{tpu_custom_call.1} parent=1 // pred_check
      _
    $region19: #{tpu_custom_call.1} parent=1 // pred_check_branch
      %42 = sbr.rel (0) target = $region21
    $region20: #{tpu_custom_call.1} parent=1 // pred_region
      %43 = dma.done [#allocation3], 16
    $region21: #{tpu_custom_call.1} parent=1 // pred_fallthru
      _
    %44 = vsyncpa [#allocation3], 1
    %45 = vsyncpa [#allocation4], 1

</llo_original>
